<compile_context>
chip_gen: v7x
topology: tpu7x:2x2x1
jax: 0.10.0
libtpu: 0.0.40
codegen_flags: <defaults>
</compile_context>

<pallas_src>
import functools

import jax
import jax.numpy as jnp
from jax.experimental import pallas as pl
from jax.experimental.pallas import tpu as pltpu

EPS = 1e-5  # matches nn.LayerNorm default


def _patch_merge_kernel(xe_ref, xo_ref, we_ref, wo_ref, cs_ref, b_ref, o_ref,
                        *, use_bf16_mxu):
    # xe_ref/xo_ref: (tm_rp, W/2, 2C)   even / odd image rows -> [x0|x2] / [x1|x3]
    # we_ref/wo_ref: (2C, 2C)           diag(gamma) @ W, rows permuted to match
    # cs_ref:        (1, 2C)            gamma @ W   (column sums of diag(gamma)@W)
    # b_ref:         (1, 2C)            beta @ W
    # o_ref:         (tm_rp * W/2, 2C)
    tm_rp, w2, seg = xe_ref.shape
    rows = tm_rp * w2

    # leading-dim merge only (layout-friendly): (tm_rp, W/2, 2C) -> (rows, 2C)
    xe = xe_ref[...].reshape(rows, seg).astype(jnp.float32)
    xo = xo_ref[...].reshape(rows, seg).astype(jnp.float32)

    # Single-pass LayerNorm statistics over the virtual 4C concat = [xe | xo].
    inv_n = 1.0 / (2.0 * seg)  # == 1 / (4*C), compile-time constant
    s = jnp.sum(xe, axis=-1, keepdims=True) + jnp.sum(xo, axis=-1, keepdims=True)
    ss = (jnp.sum(xe * xe, axis=-1, keepdims=True)
          + jnp.sum(xo * xo, axis=-1, keepdims=True))
    mean = s * inv_n
    var = ss * inv_n - mean * mean
    inv_std = jax.lax.rsqrt(var + EPS)

    if use_bf16_mxu:  # v6e/v7x: native bf16 MXU path (weights already bf16)
        xe_mm = xe.astype(jnp.bfloat16)
        xo_mm = xo.astype(jnp.bfloat16)
    else:
        xe_mm, xo_mm = xe, xo

    acc = (jnp.dot(xe_mm, we_ref[...], preferred_element_type=jnp.float32)
           + jnp.dot(xo_mm, wo_ref[...], preferred_element_type=jnp.float32))

    out = (acc - mean * cs_ref[...]) * inv_std + b_ref[...]
    o_ref[...] = out.astype(o_ref.dtype)


def patch_merging(x, gamma, beta, w_red, input_resolution, *,
                  target_block_tokens=2048, use_bf16_mxu=False):
    """x: (B, H*W, C).  gamma/beta: (4C,).  w_red: (4C, 2C).  Returns (B, H*W/4, 2C)."""
    H, W = input_resolution
    B, L, C = x.shape
    assert L == H * W, "input feature has wrong size"
    assert H % 2 == 0 and W % 2 == 0, f"x size ({H}*{W}) are not even."

    num_rp = B * (H // 2)          # number of 2-row "row pairs"
    w2 = W // 2                    # merged tokens per row pair
    seg = 2 * C                    # contiguous channels per (row parity, token)
    n_out = 2 * C
    num_tokens = num_rp * w2       # == B * (H/2) * (W/2)

    # Zero-copy view: (row-pair, row parity, merged col, 2C).  For parity 0 the
    # last dim is [x0 | x2] (even row, even/odd col); for parity 1 it's [x1 | x3].
    xv = x.reshape(num_rp, 2, w2, seg)

    # Fold LayerNorm affine + channel permutation into the reduction weight.
    w32 = w_red.astype(jnp.float32)
    g32 = gamma.astype(jnp.float32)
    b32 = beta.astype(jnp.float32)
    w_scaled = g32[:, None] * w32                                      # diag(gamma) @ W (torch row order)
    we = jnp.concatenate([w_scaled[0:C], w_scaled[2 * C:3 * C]], 0)    # rows for [x0 | x2]
    wo = jnp.concatenate([w_scaled[C:2 * C], w_scaled[3 * C:4 * C]], 0)  # rows for [x1 | x3]
    colsum = (g32 @ w32).reshape(1, n_out)                             # gamma @ W
    bias = (b32 @ w32).reshape(1, n_out)                               # beta @ W
    mm_dtype = jnp.bfloat16 if use_bf16_mxu else jnp.float32
    we = we.astype(mm_dtype)
    wo = wo.astype(mm_dtype)

    # Tile selection: biggest block that comfortably fits double-buffered VMEM.
    bytes_per_token = (2 * seg + n_out) * 4 * 2          # in (4C) + out (2C), x2 buffers
    vmem_budget = 12 * 1024 * 1024
    tokens_cap = max(w2, vmem_budget // bytes_per_token)
    tokens_per_block = min(target_block_tokens, tokens_cap)
    tm_rp = max(1, min(num_rp, tokens_per_block // w2))
    if num_rp > 1:                                       # keep >=2 grid steps (v7x: 2 TCs)
        tm_rp = min(tm_rp, pl.cdiv(num_rp, 2))
    grid = (pl.cdiv(num_rp, tm_rp),)                     # ragged tail handled by masking

    out2d = pl.pallas_call(
        functools.partial(_patch_merge_kernel, use_bf16_mxu=use_bf16_mxu),
        out_shape=jax.ShapeDtypeStruct((num_tokens, n_out), x.dtype),
        grid_spec=pltpu.PrefetchScalarGridSpec(
            num_scalar_prefetch=0,
            grid=grid,
            in_specs=[
                # same array passed twice: even image rows / odd image rows
                pl.BlockSpec((tm_rp, None, w2, seg), lambda i: (i, 0, 0, 0)),
                pl.BlockSpec((tm_rp, None, w2, seg), lambda i: (i, 1, 0, 0)),
                pl.BlockSpec((seg, n_out), lambda i: (0, 0)),
                pl.BlockSpec((seg, n_out), lambda i: (0, 0)),
                pl.BlockSpec((1, n_out), lambda i: (0, 0)),
                pl.BlockSpec((1, n_out), lambda i: (0, 0)),
            ],
            out_specs=pl.BlockSpec((tm_rp * w2, n_out), lambda i: (i, 0)),
        ),
        compiler_params=pltpu.CompilerParams(
            dimension_semantics=("parallel",),
            vmem_limit_bytes=48 * 1024 * 1024,
        ),
    )(xv, xv, we, wo, colsum, bias)

    return out2d.reshape(B, num_tokens // B, n_out)


def reference(x, gamma, beta, w_red, input_resolution):
    H, W = input_resolution
    B, L, C = x.shape
    xg = x.reshape(B, H, W, C)
    x0 = xg[:, 0::2, 0::2, :]
    x1 = xg[:, 1::2, 0::2, :]
    x2 = xg[:, 0::2, 1::2, :]
    x3 = xg[:, 1::2, 1::2, :]
    xc = jnp.concatenate([x0, x1, x2, x3], axis=-1).reshape(B, -1, 4 * C)
    mean = jnp.mean(xc, axis=-1, keepdims=True)
    var = jnp.mean((xc - mean) ** 2, axis=-1, keepdims=True)
    xn = (xc - mean) / jnp.sqrt(var + EPS)
    y = xn * gamma + beta
    return jnp.einsum("blk,kn->bln", y, w_red)


if __name__ == "__main__":
    B, H, W, C = 2, 16, 16, 32   # dim=32 -> 4C=128, 2C=64
    key = jax.random.PRNGKey(0)
    kx, kg, kb, kw = jax.random.split(key, 4)

    x = jax.random.normal(kx, (B, H * W, C), dtype=jnp.float32)
    # synthetic parameters: nn.LayerNorm(4C) affine + nn.Linear(4C, 2C, bias=False)
    gamma = 1.0 + 0.1 * jax.random.normal(kg, (4 * C,), dtype=jnp.float32)
    beta = 0.1 * jax.random.normal(kb, (4 * C,), dtype=jnp.float32)
    # stored as (4C, 2C) == transpose of torch's (2C, 4C) weight
    w_red = jax.random.normal(kw, (4 * C, 2 * C), dtype=jnp.float32) * (1.0 / (4 * C) ** 0.5)

    out = patch_merging(x, gamma, beta, w_red, (H, W))
    out = jax.block_until_ready(out)

    ref = reference(x, gamma, beta, w_red, (H, W))
    assert out.shape == (B, (H // 2) * (W // 2), 2 * C), out.shape
    max_err = float(jnp.max(jnp.abs(out - ref)))
    assert jnp.allclose(out, ref, atol=2e-4, rtol=2e-4), max_err

    print("KERNEL_OK")
</pallas_src>

<mosaic_0001>
module attributes {stable_mosaic.version = 11 : i64} {
  func.func @_patch_merge_kernel(%arg0: i32, %arg1: memref<8x1x8x64xf32, #tpu.memory_space<vmem>>, %arg2: memref<8x1x8x64xf32, #tpu.memory_space<vmem>>, %arg3: memref<64x64xf32, #tpu.memory_space<vmem>>, %arg4: memref<64x64xf32, #tpu.memory_space<vmem>>, %arg5: memref<1x64xf32, #tpu.memory_space<vmem>>, %arg6: memref<1x64xf32, #tpu.memory_space<vmem>>, %arg7: memref<64x64xf32, #tpu.memory_space<vmem>>) attributes {dimension_semantics = [#tpu.dimension_semantics<parallel>], iteration_bounds = array<i64: 2>, scalar_prefetch = 0 : i64, scratch_operands = 0 : i64, tpu.core_type = #tpu.core_type<tc>, window_params = [{transform_indices = @transform_0, window_bounds = array<i64: 8, 1, 8, 64>}, {transform_indices = @transform_1, window_bounds = array<i64: 8, 1, 8, 64>}, {pipeline_mode = #tpu.pipeline_mode<synchronous>, transform_indices = @transform_2, window_bounds = array<i64: 64, 64>}, {pipeline_mode = #tpu.pipeline_mode<synchronous>, transform_indices = @transform_3, window_bounds = array<i64: 64, 64>}, {pipeline_mode = #tpu.pipeline_mode<synchronous>, transform_indices = @transform_4, window_bounds = array<i64: 1, 64>}, {pipeline_mode = #tpu.pipeline_mode<synchronous>, transform_indices = @transform_5, window_bounds = array<i64: 1, 64>}, {transform_indices = @transform_6, window_bounds = array<i64: 64, 64>}]} {
    %c0 = arith.constant 0 : index
    %c0_0 = arith.constant 0 : index
    %c0_1 = arith.constant 0 : index
    %c0_2 = arith.constant 0 : index
    %0 = vector.load %arg1[%c0, %c0_0, %c0_1, %c0_2] : memref<8x1x8x64xf32, #tpu.memory_space<vmem>>, vector<8x1x8x64xf32>
    %1 = vector.shape_cast %0 : vector<8x1x8x64xf32> to vector<8x8x64xf32>
    %2 = vector.shape_cast %1 : vector<8x8x64xf32> to vector<64x64xf32>
    %c0_3 = arith.constant 0 : index
    %c0_4 = arith.constant 0 : index
    %c0_5 = arith.constant 0 : index
    %c0_6 = arith.constant 0 : index
    %3 = vector.load %arg2[%c0_3, %c0_4, %c0_5, %c0_6] : memref<8x1x8x64xf32, #tpu.memory_space<vmem>>, vector<8x1x8x64xf32>
    %4 = vector.shape_cast %3 : vector<8x1x8x64xf32> to vector<8x8x64xf32>
    %5 = vector.shape_cast %4 : vector<8x8x64xf32> to vector<64x64xf32>
    %cst = arith.constant dense<0.000000e+00> : vector<64xf32>
    %6 = vector.multi_reduction <add>, %2, %cst [1] : vector<64x64xf32> to vector<64xf32>
    %7 = vector.shape_cast %6 : vector<64xf32> to vector<64x1xf32>
    %cst_7 = arith.constant dense<0.000000e+00> : vector<64xf32>
    %8 = vector.multi_reduction <add>, %5, %cst_7 [1] : vector<64x64xf32> to vector<64xf32>
    %9 = vector.shape_cast %8 : vector<64xf32> to vector<64x1xf32>
    %10 = arith.addf %7, %9 : vector<64x1xf32>
    %11 = arith.mulf %2, %2 : vector<64x64xf32>
    %cst_8 = arith.constant dense<0.000000e+00> : vector<64xf32>
    %12 = vector.multi_reduction <add>, %11, %cst_8 [1] : vector<64x64xf32> to vector<64xf32>
    %13 = vector.shape_cast %12 : vector<64xf32> to vector<64x1xf32>
    %14 = arith.mulf %5, %5 : vector<64x64xf32>
    %cst_9 = arith.constant dense<0.000000e+00> : vector<64xf32>
    %15 = vector.multi_reduction <add>, %14, %cst_9 [1] : vector<64x64xf32> to vector<64xf32>
    %16 = vector.shape_cast %15 : vector<64xf32> to vector<64x1xf32>
    %17 = arith.addf %13, %16 : vector<64x1xf32>
    %cst_10 = arith.constant 7.812500e-03 : f32
    %18 = vector.broadcast %cst_10 : f32 to vector<64x1xf32>
    %19 = arith.mulf %10, %18 : vector<64x1xf32>
    %cst_11 = arith.constant 7.812500e-03 : f32
    %20 = vector.broadcast %cst_11 : f32 to vector<64x1xf32>
    %21 = arith.mulf %17, %20 : vector<64x1xf32>
    %22 = arith.mulf %19, %19 : vector<64x1xf32>
    %23 = arith.subf %21, %22 : vector<64x1xf32>
    %cst_12 = arith.constant 9.99999974E-6 : f32
    %24 = vector.broadcast %cst_12 : f32 to vector<64x1xf32>
    %25 = arith.addf %23, %24 : vector<64x1xf32>
    %26 = math.rsqrt %25 : vector<64x1xf32>
    %c0_13 = arith.constant 0 : index
    %c0_14 = arith.constant 0 : index
    %27 = vector.load %arg3[%c0_13, %c0_14] : memref<64x64xf32, #tpu.memory_space<vmem>>, vector<64x64xf32>
    %cst_15 = arith.constant dense<0.000000e+00> : vector<64x64xf32>
    %28 = tpu.matmul %2, %27, %cst_15 {dimension_numbers = #tpu.dot_dimension_numbers<[1], [0], [0], [1], [0, 0, 1, 1], [], []>} : vector<64x64xf32>, vector<64x64xf32>, vector<64x64xf32> -> vector<64x64xf32>
    %c0_16 = arith.constant 0 : index
    %c0_17 = arith.constant 0 : index
    %29 = vector.load %arg4[%c0_16, %c0_17] : memref<64x64xf32, #tpu.memory_space<vmem>>, vector<64x64xf32>
    %cst_18 = arith.constant dense<0.000000e+00> : vector<64x64xf32>
    %30 = tpu.matmul %5, %29, %cst_18 {dimension_numbers = #tpu.dot_dimension_numbers<[1], [0], [0], [1], [0, 0, 1, 1], [], []>} : vector<64x64xf32>, vector<64x64xf32>, vector<64x64xf32> -> vector<64x64xf32>
    %31 = arith.addf %28, %30 : vector<64x64xf32>
    %c0_19 = arith.constant 0 : index
    %c0_20 = arith.constant 0 : index
    %32 = vector.load %arg5[%c0_19, %c0_20] : memref<1x64xf32, #tpu.memory_space<vmem>>, vector<1x64xf32>
    %33 = vector.broadcast %19 : vector<64x1xf32> to vector<64x64xf32>
    %34 = vector.broadcast %32 : vector<1x64xf32> to vector<64x64xf32>
    %35 = arith.mulf %33, %34 : vector<64x64xf32>
    %36 = arith.subf %31, %35 : vector<64x64xf32>
    %37 = vector.broadcast %26 : vector<64x1xf32> to vector<64x64xf32>
    %38 = arith.mulf %36, %37 : vector<64x64xf32>
    %c0_21 = arith.constant 0 : index
    %c0_22 = arith.constant 0 : index
    %39 = vector.load %arg6[%c0_21, %c0_22] : memref<1x64xf32, #tpu.memory_space<vmem>>, vector<1x64xf32>
    %40 = vector.broadcast %39 : vector<1x64xf32> to vector<64x64xf32>
    %41 = arith.addf %38, %40 : vector<64x64xf32>
    %c0_23 = arith.constant 0 : index
    %c0_24 = arith.constant 0 : index
    %42 = vector.load %arg7[%c0_23, %c0_24] : memref<64x64xf32, #tpu.memory_space<vmem>>, vector<64x64xf32>
    tpu.vector_store %arg7[%c0_23, %c0_24], %41 {strides = array<i32>} : memref<64x64xf32, #tpu.memory_space<vmem>>, vector<64x64xf32>,
    return
  }
  func.func @transform_0(%arg0: i32) -> (i32, i32, i32, i32) {
    %c0_i32 = arith.constant 0 : i32
    %c0_i32_0 = arith.constant 0 : i32
    %c0_i32_1 = arith.constant 0 : i32
    %c0_i32_2 = arith.constant 0 : i32
    return %arg0, %c0_i32, %c0_i32_0, %c0_i32_1 : i32, i32, i32, i32
  }
  func.func @transform_1(%arg0: i32) -> (i32, i32, i32, i32) {
    %c1_i32 = arith.constant 1 : i32
    %c0_i32 = arith.constant 0 : i32
    %c0_i32_0 = arith.constant 0 : i32
    %c0_i32_1 = arith.constant 0 : i32
    return %arg0, %c1_i32, %c0_i32, %c0_i32_0 : i32, i32, i32, i32
  }
  func.func @transform_2(%arg0: i32) -> (i32, i32) {
    %c0_i32 = arith.constant 0 : i32
    %c0_i32_0 = arith.constant 0 : i32
    %c0_i32_1 = arith.constant 0 : i32
    return %c0_i32, %c0_i32_0 : i32, i32
  }
  func.func @transform_3(%arg0: i32) -> (i32, i32) {
    %c0_i32 = arith.constant 0 : i32
    %c0_i32_0 = arith.constant 0 : i32
    %c0_i32_1 = arith.constant 0 : i32
    return %c0_i32, %c0_i32_0 : i32, i32
  }
  func.func @transform_4(%arg0: i32) -> (i32, i32) {
    %c0_i32 = arith.constant 0 : i32
    %c0_i32_0 = arith.constant 0 : i32
    %c0_i32_1 = arith.constant 0 : i32
    return %c0_i32, %c0_i32_0 : i32, i32
  }
  func.func @transform_5(%arg0: i32) -> (i32, i32) {
    %c0_i32 = arith.constant 0 : i32
    %c0_i32_0 = arith.constant 0 : i32
    %c0_i32_1 = arith.constant 0 : i32
    return %c0_i32, %c0_i32_0 : i32, i32
  }
  func.func @transform_6(%arg0: i32) -> (i32, i32) {
    %c0_i32 = arith.constant 0 : i32
    %c0_i32_0 = arith.constant 0 : i32
    return %arg0, %c0_i32 : i32, i32
  }
}

</mosaic_0001>

<llo_original>
// kernel: tpu_custom_call.1
$region0: #{tpu_custom_call.1}
  #allocation0 [shape = 'u32[]', space=smem, size = 0x4, offset = 0x4, fixed_abs, tag = 'smem constant byte address 0x4 - core index']
  #allocation1 [shape = 'u32[144,128]{1,0:T(1,128)}', space=vmem, size = 0x12000, scoped, tag = 'internal scratch']
  %s0 = inlined_call_operand.hbm [shape: f32[16,2,8,64], index: 0, kind: input, shape index: {}]
  %s1 = inlined_call_operand.hbm [shape: f32[16,2,8,64], index: 1, kind: input, shape index: {}]
  %s2 = inlined_call_operand.hbm [shape: f32[64,64], index: 2, kind: input, shape index: {}]
  %s3 = inlined_call_operand.hbm [shape: f32[64,64], index: 3, kind: input, shape index: {}]
  %s4 = inlined_call_operand.vmem [shape: f32[1,64], index: 4, kind: input, shape index: {}]
  %s5 = inlined_call_operand.vmem [shape: f32[1,64], index: 5, kind: input, shape index: {}]
  %s6 = inlined_call_operand.vmem [shape: f32[128,64], index: 6, kind: output, shape index: {}]
  %s7 = sld [smem:[#allocation0]]
  $region73: #{tpu_custom_call.1} parent=0
    _
  %s9 = ssub.s32 1, %s7
  %s10 = scalar_select 0, %s9, %s7
  $region1: #{tpu_custom_call.1} parent=0
    #allocation2 [shape = 'u8[65536]{0}', space=vmem, size = 0x10000, scoped, tag = 'input window, operand 0']
    #allocation3 [shape = 's32[2]{0}', space=sflag, size = 0x8, scoped, tag = 'scoped memory for tpu_custom_call.1']
    #allocation4 [shape = 'u8[65536]{0}', space=vmem, size = 0x10000, scoped, tag = 'input window, operand 1']
    #allocation5 [shape = 's32[2]{0}', space=sflag, size = 0x8, scoped, tag = 'scoped memory for tpu_custom_call.1']
    #allocation6 [shape = 'u8[32768]{0}', space=vmem, size = 0x8000, scoped, tag = 'input window, operand 2, single buffered']
    #allocation7 [shape = 'u8[32768]{0}', space=vmem, size = 0x8000, scoped, tag = 'input window, operand 3, single buffered']
    #allocation8 [shape = 's32[1]{0}', space=sflag, size = 0x4, scoped, tag = 'scoped memory for tpu_custom_call.1']
    %11 = vsyncpa [#allocation3], 0
    %s12 = scalar_lea.sflag [#allocation3], 1
    %13 = vsyncpa %s12, 0
    %14 = vsyncpa [#allocation5], 0
    %s15 = scalar_lea.sflag [#allocation5], 1
    %16 = vsyncpa %s15, 0
    %17 = vsyncpa [#allocation8], 0
    loop: start=0, step=1, limit=4
    $region2: #{tpu_custom_call.1} parent=1 // loop_pre_header
      _
    $region3: #{tpu_custom_call.1} parent=1 // loop_header
      %s19 = sphi 0, %s23
      %p20 = scmp.ge.s32.totalorder %s19, 4
      %s29 = sphi 0, %s31
      %s32 = sphi 0, %s29
      %s33 = sphi 0, %s32
      %s49 = sphi 0, %s33
      %s55 = sphi 0, %s57
      %s58 = sphi 0, %s55
      %s59 = sphi 0, %s58
      %s75 = sphi 0, %s59
      %s79 = sphi 0, %s79
      %s81 = sphi 0, %s79
      %s82 = sphi 0, %s81
      %s96 = sphi 0, %s82
      %s100 = sphi 0, %s100
      %s102 = sphi 0, %s100
      %s103 = sphi 0, %s102
      %s117 = sphi 0, %s103
      %s121 = sphi 0, %s121
      %s123 = sphi 0, %s121
      %s124 = sphi 0, %s123
      %s138 = sphi 0, %s124
      %s142 = sphi 0, %s142
      %s144 = sphi 0, %s142
      %s145 = sphi 0, %s144
      %s159 = sphi 0, %s145
      %s165 = sphi 0, %s167
      %s168 = sphi 0, %s165
      %s169 = sphi 0, %s168
      %s185 = sphi 0, %s169
    $region4: #{tpu_custom_call.1} parent=1 // loop_header_branch
      %22 = sbr.rel (%p20) target = $region8
    $region5: #{tpu_custom_call.1} parent=1 // loop_body
      %s24 = ssub.s32 %s19, 1
      %s25 = ssub.s32 %s19, 2
      %s26 = sadd.s32 %s19, 1
      %s27 = ssub.s32 %s19, %s26
      %p28 = scmp.eq.s32.totalorder %s27, 0
      %s30 = sadd.s32 %s29, 1
      %s31 = scalar_select %p28, %s29, %s30
      %p34 = pneg %p28
      %p35 = scmp.eq.s32.totalorder %s19, 1
      %p36 = por %p34, %p35
      %p37 = scmp.ne.s32.totalorder %s29, %s32
      %p38 = scmp.eq.s32.totalorder %s19, 0
      %p39 = por %p37, %p38
      %p40 = scmp.ne.s32.totalorder %s29, %s32
      %p41 = scmp.eq.s32.totalorder %s24, 1
      %p42 = por %p40, %p41
      %p43 = scmp.ne.s32.totalorder %s32, %s33
      %p44 = scmp.eq.s32.totalorder %s24, 0
      %p45 = por %p43, %p44
      %p46 = scmp.ne.s32.totalorder %s32, %s33
      %p47 = scmp.eq.s32.totalorder %s25, 1
      %p48 = por %p46, %p47
      %p50 = scmp.ne.s32.totalorder %s33, %s49
      %p51 = scmp.eq.s32.totalorder %s25, 0
      %p52 = por %p50, %p51
      %s53 = ssub.s32 %s19, %s26
      %p54 = scmp.eq.s32.totalorder %s53, 0
      %s56 = sadd.s32 %s55, 1
      %s57 = scalar_select %p54, %s55, %s56
      %p60 = pneg %p54
      %p61 = scmp.eq.s32.totalorder %s19, 1
      %p62 = por %p60, %p61
      %p63 = scmp.ne.s32.totalorder %s55, %s58
      %p64 = scmp.eq.s32.totalorder %s19, 0
      %p65 = por %p63, %p64
      %p66 = scmp.ne.s32.totalorder %s55, %s58
      %p67 = scmp.eq.s32.totalorder %s24, 1
      %p68 = por %p66, %p67
      %p69 = scmp.ne.s32.totalorder %s58, %s59
      %p70 = scmp.eq.s32.totalorder %s24, 0
      %p71 = por %p69, %p70
      %p72 = scmp.ne.s32.totalorder %s58, %s59
      %p73 = scmp.eq.s32.totalorder %s25, 1
      %p74 = por %p72, %p73
      %p76 = scmp.ne.s32.totalorder %s59, %s75
      %p77 = scmp.eq.s32.totalorder %s25, 0
      %p78 = por %p76, %p77
      %s80 = sadd.s32 %s79, 1
      %p83 = scmp.eq.s32.totalorder %s19, 1
      %p84 = scmp.ne.s32.totalorder %s79, %s81
      %p85 = scmp.eq.s32.totalorder %s19, 0
      %p86 = por %p84, %p85
      %p87 = scmp.ne.s32.totalorder %s79, %s81
      %p88 = scmp.eq.s32.totalorder %s24, 1
      %p89 = por %p87, %p88
      %p90 = scmp.ne.s32.totalorder %s81, %s82
      %p91 = scmp.eq.s32.totalorder %s24, 0
      %p92 = por %p90, %p91
      %p93 = scmp.ne.s32.totalorder %s81, %s82
      %p94 = scmp.eq.s32.totalorder %s25, 1
      %p95 = por %p93, %p94
      %p97 = scmp.ne.s32.totalorder %s82, %s96
      %p98 = scmp.eq.s32.totalorder %s25, 0
      %p99 = por %p97, %p98
      %s101 = sadd.s32 %s100, 1
      %p104 = scmp.eq.s32.totalorder %s19, 1
      %p105 = scmp.ne.s32.totalorder %s100, %s102
      %p106 = scmp.eq.s32.totalorder %s19, 0
      %p107 = por %p105, %p106
      %p108 = scmp.ne.s32.totalorder %s100, %s102
      %p109 = scmp.eq.s32.totalorder %s24, 1
      %p110 = por %p108, %p109
      %p111 = scmp.ne.s32.totalorder %s102, %s103
      %p112 = scmp.eq.s32.totalorder %s24, 0
      %p113 = por %p111, %p112
      %p114 = scmp.ne.s32.totalorder %s102, %s103
      %p115 = scmp.eq.s32.totalorder %s25, 1
      %p116 = por %p114, %p115
      %p118 = scmp.ne.s32.totalorder %s103, %s117
      %p119 = scmp.eq.s32.totalorder %s25, 0
      %p120 = por %p118, %p119
      %s122 = sadd.s32 %s121, 1
      %p125 = scmp.eq.s32.totalorder %s19, 1
      %p126 = scmp.ne.s32.totalorder %s121, %s123
      %p127 = scmp.eq.s32.totalorder %s19, 0
      %p128 = por %p126, %p127
      %p129 = scmp.ne.s32.totalorder %s121, %s123
      %p130 = scmp.eq.s32.totalorder %s24, 1
      %p131 = por %p129, %p130
      %p132 = scmp.ne.s32.totalorder %s123, %s124
      %p133 = scmp.eq.s32.totalorder %s24, 0
      %p134 = por %p132, %p133
      %p135 = scmp.ne.s32.totalorder %s123, %s124
      %p136 = scmp.eq.s32.totalorder %s25, 1
      %p137 = por %p135, %p136
      %p139 = scmp.ne.s32.totalorder %s124, %s138
      %p140 = scmp.eq.s32.totalorder %s25, 0
      %p141 = por %p139, %p140
      %s143 = sadd.s32 %s142, 1
      %p146 = scmp.eq.s32.totalorder %s19, 1
      %p147 = scmp.ne.s32.totalorder %s142, %s144
      %p148 = scmp.eq.s32.totalorder %s19, 0
      %p149 = por %p147, %p148
      %p150 = scmp.ne.s32.totalorder %s142, %s144
      %p151 = scmp.eq.s32.totalorder %s24, 1
      %p152 = por %p150, %p151
      %p153 = scmp.ne.s32.totalorder %s144, %s145
      %p154 = scmp.eq.s32.totalorder %s24, 0
      %p155 = por %p153, %p154
      %p156 = scmp.ne.s32.totalorder %s144, %s145
      %p157 = scmp.eq.s32.totalorder %s25, 1
      %p158 = por %p156, %p157
      %p160 = scmp.ne.s32.totalorder %s145, %s159
      %p161 = scmp.eq.s32.totalorder %s25, 0
      %p162 = por %p160, %p161
      %s163 = ssub.s32 %s19, %s26
      %p164 = scmp.eq.s32.totalorder %s163, 0
      %s166 = sadd.s32 %s165, 1
      %s167 = scalar_select %p164, %s165, %s166
      %p170 = pneg %p164
      %p171 = scmp.eq.s32.totalorder %s19, 1
      %p172 = por %p170, %p171
      %p173 = scmp.ne.s32.totalorder %s165, %s168
      %p174 = scmp.eq.s32.totalorder %s19, 0
      %p175 = por %p173, %p174
      %p176 = scmp.ne.s32.totalorder %s165, %s168
      %p177 = scmp.eq.s32.totalorder %s24, 1
      %p178 = por %p176, %p177
      %p179 = scmp.ne.s32.totalorder %s168, %s169
      %p180 = scmp.eq.s32.totalorder %s24, 0
      %p181 = por %p179, %p180
      %p182 = scmp.ne.s32.totalorder %s168, %s169
      %p183 = scmp.eq.s32.totalorder %s25, 1
      %p184 = por %p182, %p183
      %p186 = scmp.ne.s32.totalorder %s169, %s185
      %p187 = scmp.eq.s32.totalorder %s25, 0
      %p188 = por %p186, %p187
      %p189 = scmp.le.s32.totalorder 1, %s19
      %p190 = scmp.lt.s32.totalorder %s19, 3
      %p191 = pnand %p189, %p190
      %p192 = pneg %p191
      // Predicated region
      $region9: #{tpu_custom_call.1} parent=5 // pred_check
        _
      $region10: #{tpu_custom_call.1} parent=5 // pred_check_branch
        %194 = sbr.rel (%p191) target = $region12
      $region11: #{tpu_custom_call.1} parent=5 // pred_region
        %s195 = ssub.s32 %s19, 1
        // Predicated region
        $region13: #{tpu_custom_call.1} parent=11 // pred_check
          %p196 = pneg %p92
        $region14: #{tpu_custom_call.1} parent=11 // pred_check_branch
          %198 = sbr.rel (%p196) target = $region16
        $region15: #{tpu_custom_call.1} parent=11 // pred_region
          %s200 = ssub.s32 1024, 1024
          %201 = vsyncadd [#allocation5], %s200
          %s202 = sshll.u32 [#allocation6], 4
          %s203 = int_to_ptr.vmem [resolvable:$true] %s202
          %208 = dma.hbm_to_vmem [thread:$0]  %s2, 1024, %s203, [#allocation5], 128, 128, 8
        $region16: #{tpu_custom_call.1} parent=11 // pred_fallthru
          _
        // Predicated region
        $region17: #{tpu_custom_call.1} parent=11 // pred_check
          %p209 = pneg %p113
        $region18: #{tpu_custom_call.1} parent=11 // pred_check_branch
          %211 = sbr.rel (%p209) target = $region20
        $region19: #{tpu_custom_call.1} parent=11 // pred_region
          %s213 = ssub.s32 1024, 1024
          %214 = vsyncadd [#allocation8], %s213
          %s215 = sshll.u32 [#allocation7], 4
          %s216 = int_to_ptr.vmem [resolvable:$true] %s215
          %221 = dma.hbm_to_vmem [thread:$0]  %s3, 1024, %s216, [#allocation8], 128, 128, 8
        $region20: #{tpu_custom_call.1} parent=11 // pred_fallthru
          _
        // Predicated region
        $region21: #{tpu_custom_call.1} parent=11 // pred_check
          %p222 = pneg %p134
        $region22: #{tpu_custom_call.1} parent=11 // pred_check_branch
          %224 = sbr.rel (%p222) target = $region24
        $region23: #{tpu_custom_call.1} parent=11 // pred_region
          _
        $region24: #{tpu_custom_call.1} parent=11 // pred_fallthru
          _
        // Predicated region
        $region25: #{tpu_custom_call.1} parent=11 // pred_check
          %p225 = pneg %p155
        $region26: #{tpu_custom_call.1} parent=11 // pred_check_branch
          %227 = sbr.rel (%p225) target = $region28
        $region27: #{tpu_custom_call.1} parent=11 // pred_region
          _
        $region28: #{tpu_custom_call.1} parent=11 // pred_fallthru
          _
      $region12: #{tpu_custom_call.1} parent=5 // pred_fallthru
        _
      %p228 = scmp.lt.s32.totalorder %s19, 2
      // Predicated region
      $region29: #{tpu_custom_call.1} parent=5 // pred_check
        %p229 = pneg %p228
      $region30: #{tpu_custom_call.1} parent=5 // pred_check_branch
        %231 = sbr.rel (%p229) target = $region32
      $region31: #{tpu_custom_call.1} parent=5 // pred_region
        // Predicated region
        $region33: #{tpu_custom_call.1} parent=31 // pred_check
          %p232 = pneg %p39
        $region34: #{tpu_custom_call.1} parent=31 // pred_check_branch
          %234 = sbr.rel (%p232) target = $region36
        $region35: #{tpu_custom_call.1} parent=31 // pred_region
          %s235 = sand.u32 %s29, 1
          %s236 = scalar_lea.sflag [#allocation3], %s235
          %s237 = sand.u32 %s29, 1
          %s238 = smul.addr %s237, 64
          %s239 = scalar_lea.vmem [#allocation2], %s238
          %s240 = smul.u32 8, %s19
          %s242 = ssub.s32 1024, 1024
          %243 = vsyncadd %s236, %s242
          %s244 = smul.addr %s240, 2
          %s245 = smul.addr %s244, 128
          %s246 = scalar_lea.hbm %s0, %s245
          %s247 = sshll.u32 %s239, 4
          %s248 = int_to_ptr.vmem [resolvable:$true] %s247
          %253 = dma.hbm_to_vmem [thread:$0]  %s246, 1024, %s248, %s236, 256, 128, 8
        $region36: #{tpu_custom_call.1} parent=31 // pred_fallthru
          _
        // Predicated region
        $region37: #{tpu_custom_call.1} parent=31 // pred_check
          %p254 = pneg %p65
        $region38: #{tpu_custom_call.1} parent=31 // pred_check_branch
          %256 = sbr.rel (%p254) target = $region40
        $region39: #{tpu_custom_call.1} parent=31 // pred_region
          %s257 = sand.u32 %s19, 1
          %s258 = scalar_lea.sflag [#allocation5], %s257
          %s259 = sand.u32 %s55, 1
          %s260 = smul.addr %s259, 64
          %s261 = scalar_lea.vmem [#allocation4], %s260
          %s262 = smul.u32 8, %s19
          %s264 = ssub.s32 1024, 1024
          %265 = vsyncadd %s258, %s264
          %s266 = smul.addr %s262, 2
          %s267 = sadd.s32 1, %s266
          %s268 = smul.addr %s267, 128
          %s269 = scalar_lea.hbm %s1, %s268
          %s270 = sshll.u32 %s261, 4
          %s271 = int_to_ptr.vmem [resolvable:$true] %s270
          %276 = dma.hbm_to_vmem [thread:$0]  %s269, 1024, %s271, %s258, 256, 128, 8
        $region40: #{tpu_custom_call.1} parent=31 // pred_fallthru
          _
      $region32: #{tpu_custom_call.1} parent=5 // pred_fallthru
        _
      %p277 = scmp.le.s32.totalorder 1, %s19
      %p278 = scmp.lt.s32.totalorder %s19, 3
      %p279 = pnand %p277, %p278
      %p280 = pneg %p279
      // Predicated region
      $region41: #{tpu_custom_call.1} parent=5 // pred_check
        _
      $region42: #{tpu_custom_call.1} parent=5 // pred_check_branch
        %282 = sbr.rel (%p279) target = $region44
      $region43: #{tpu_custom_call.1} parent=5 // pred_region
        %s283 = ssub.s32 %s19, 1
        %s284 = sand.u32 %s32, 1
        %s285 = scalar_lea.sflag [#allocation3], %s284
        %s286 = sand.u32 %s32, 1
        %s287 = smul.addr %s286, 64
        %s288 = scalar_lea.vmem [#allocation2], %s287
        // Predicated region
        $region45: #{tpu_custom_call.1} parent=43 // pred_check
          %p289 = pneg %p45
        $region46: #{tpu_custom_call.1} parent=43 // pred_check_branch
          %291 = sbr.rel (%p289) target = $region48
        $region47: #{tpu_custom_call.1} parent=43 // pred_region
          %292 = dma.done %s285, 1024
        $region48: #{tpu_custom_call.1} parent=43 // pred_fallthru
          _
        %s293 = sand.u32 %s24, 1
        %s294 = scalar_lea.sflag [#allocation5], %s293
        %s295 = sand.u32 %s58, 1
        %s296 = smul.addr %s295, 64
        %s297 = scalar_lea.vmem [#allocation4], %s296
        // Predicated region
        $region49: #{tpu_custom_call.1} parent=43 // pred_check
          %p298 = pneg %p71
        $region50: #{tpu_custom_call.1} parent=43 // pred_check_branch
          %300 = sbr.rel (%p298) target = $region52
        $region51: #{tpu_custom_call.1} parent=43 // pred_region
          %301 = dma.done %s294, 1024
        $region52: #{tpu_custom_call.1} parent=43 // pred_fallthru
          _
        // Predicated region
        $region53: #{tpu_custom_call.1} parent=43 // pred_check
          %p302 = pneg %p92
        $region54: #{tpu_custom_call.1} parent=43 // pred_check_branch
          %304 = sbr.rel (%p302) target = $region56
        $region55: #{tpu_custom_call.1} parent=43 // pred_region
          %305 = dma.done [#allocation5], 1024
        $region56: #{tpu_custom_call.1} parent=43 // pred_fallthru
          _
        // Predicated region
        $region57: #{tpu_custom_call.1} parent=43 // pred_check
          %p306 = pneg %p113
        $region58: #{tpu_custom_call.1} parent=43 // pred_check_branch
          %308 = sbr.rel (%p306) target = $region60
        $region59: #{tpu_custom_call.1} parent=43 // pred_region
          %309 = dma.done [#allocation8], 1024
        $region60: #{tpu_custom_call.1} parent=43 // pred_fallthru
          _
        %s310 = sand.u32 %s32, 1
        %s311 = scalar_lea.sflag [#allocation3], %s310
        %s312 = sand.u32 %s32, 1
        %s313 = smul.addr %s312, 64
        %s314 = scalar_lea.vmem [#allocation2], %s313
        %p315 = pneg %p45
        %p316 = pneg %p42
        %s317 = sand.u32 %s24, 1
        %s318 = scalar_lea.sflag [#allocation5], %s317
        %s319 = sand.u32 %s58, 1
        %s320 = smul.addr %s319, 64
        %s321 = scalar_lea.vmem [#allocation4], %s320
        %p322 = pneg %p71
        %p323 = pneg %p68
        %p324 = pneg %p92
        %p325 = pneg %p89
        %p326 = pneg %p113
        %p327 = pneg %p110
        %p328 = pneg %p134
        %p329 = pneg %p131
        %p330 = pneg %p155
        %p331 = pneg %p152
        %p332 = pneg %p181
        %p333 = pneg %p178
        %s334 = smul.u32 8, %s24
        %p335 = scmp.lt.s32.totalorder %s334, 15
        %s336 = scalar_select %p335, %s334, 15
        %s337 = smul.addr %s336, 8
        %s338 = scalar_lea.vmem %s6, %s337
        %s339 = smul.u32 8, %s24
        %s340 = smul.u32 8, %s24
        %s341 = smul.u32 8, %s24
        %p342 = scmp.lt.s32.totalorder %s341, 15
        %s343 = scalar_select %p342, %s341, 15
        %s344 = smul.addr %s343, 8
        %s345 = scalar_lea.vmem %s6, %s344
        %s346 = smul.u32 8, %s24
        %v347 = vld [vmem:[%s288] sm:$0xff]
        %v348 = vld [vmem:[%s288 + $0x8] sm:$0xff]
        %v349 = vld [vmem:[%s288 + $0x10] sm:$0xff]
        %v350 = vld [vmem:[%s288 + $0x18] sm:$0xff]
        %v351 = vld [vmem:[%s288 + $0x20] sm:$0xff]
        %v352 = vld [vmem:[%s288 + $0x28] sm:$0xff]
        %v353 = vld [vmem:[%s288 + $0x30] sm:$0xff]
        %v354 = vld [vmem:[%s288 + $0x38] sm:$0xff]
        %v355 = vld [vmem:[%s297] sm:$0xff]
        %v356 = vld [vmem:[%s297 + $0x8] sm:$0xff]
        %v357 = vld [vmem:[%s297 + $0x10] sm:$0xff]
        %v358 = vld [vmem:[%s297 + $0x18] sm:$0xff]
        %v359 = vld [vmem:[%s297 + $0x20] sm:$0xff]
        %v360 = vld [vmem:[%s297 + $0x28] sm:$0xff]
        %v361 = vld [vmem:[%s297 + $0x30] sm:$0xff]
        %v362 = vld [vmem:[%s297 + $0x38] sm:$0xff]
        %vm363 = vcmask 523264
        %v364 = vsel %vm363, %v347, 0.0
        %365 = vadd.xlane.f32.xlu0 %v364
        %v366 = vpop.xlane.xlu0 %365
        %v367 = vsel %vm363, %v348, 0.0
        %368 = vadd.xlane.f32.xlu0 %v367
        %v369 = vpop.xlane.xlu0 %368
        %v370 = vsel %vm363, %v349, 0.0
        %371 = vadd.xlane.f32.xlu0 %v370
        %v372 = vpop.xlane.xlu0 %371
        %v373 = vsel %vm363, %v350, 0.0
        %374 = vadd.xlane.f32.xlu0 %v373
        %v375 = vpop.xlane.xlu0 %374
        %v376 = vsel %vm363, %v351, 0.0
        %377 = vadd.xlane.f32.xlu0 %v376
        %v378 = vpop.xlane.xlu0 %377
        %v379 = vsel %vm363, %v352, 0.0
        %380 = vadd.xlane.f32.xlu0 %v379
        %v381 = vpop.xlane.xlu0 %380
        %v382 = vsel %vm363, %v353, 0.0
        %383 = vadd.xlane.f32.xlu0 %v382
        %v384 = vpop.xlane.xlu0 %383
        %v385 = vsel %vm363, %v354, 0.0
        %386 = vadd.xlane.f32.xlu0 %v385
        %v387 = vpop.xlane.xlu0 %386
        %v388 = vsel %vm363, %v355, 0.0
        %389 = vadd.xlane.f32.xlu0 %v388
        %v390 = vpop.xlane.xlu0 %389
        %v391 = vsel %vm363, %v356, 0.0
        %392 = vadd.xlane.f32.xlu0 %v391
        %v393 = vpop.xlane.xlu0 %392
        %v394 = vsel %vm363, %v357, 0.0
        %395 = vadd.xlane.f32.xlu0 %v394
        %v396 = vpop.xlane.xlu0 %395
        %v397 = vsel %vm363, %v358, 0.0
        %398 = vadd.xlane.f32.xlu0 %v397
        %v399 = vpop.xlane.xlu0 %398
        %v400 = vsel %vm363, %v359, 0.0
        %401 = vadd.xlane.f32.xlu0 %v400
        %v402 = vpop.xlane.xlu0 %401
        %v403 = vsel %vm363, %v360, 0.0
        %404 = vadd.xlane.f32.xlu0 %v403
        %v405 = vpop.xlane.xlu0 %404
        %v406 = vsel %vm363, %v361, 0.0
        %407 = vadd.xlane.f32.xlu0 %v406
        %v408 = vpop.xlane.xlu0 %407
        %v409 = vsel %vm363, %v362, 0.0
        %410 = vadd.xlane.f32.xlu0 %v409
        %v411 = vpop.xlane.xlu0 %410
        %v412 = vadd.f32 %v366, %v390
        %v413 = vadd.f32 %v369, %v393
        %v414 = vadd.f32 %v372, %v396
        %v415 = vadd.f32 %v375, %v399
        %v416 = vadd.f32 %v378, %v402
        %v417 = vadd.f32 %v381, %v405
        %v418 = vadd.f32 %v384, %v408
        %v419 = vadd.f32 %v387, %v411
        %v420 = vmul.f32 %v347, %v347
        %v421 = vmul.f32 %v348, %v348
        %v422 = vmul.f32 %v349, %v349
        %v423 = vmul.f32 %v350, %v350
        %v424 = vmul.f32 %v351, %v351
        %v425 = vmul.f32 %v352, %v352
        %v426 = vmul.f32 %v353, %v353
        %v427 = vmul.f32 %v354, %v354
        %v428 = vsel %vm363, %v420, 0.0
        %429 = vadd.xlane.f32.xlu0 %v428
        %v430 = vpop.xlane.xlu0 %429
        %v431 = vsel %vm363, %v421, 0.0
        %432 = vadd.xlane.f32.xlu0 %v431
        %v433 = vpop.xlane.xlu0 %432
        %v434 = vsel %vm363, %v422, 0.0
        %435 = vadd.xlane.f32.xlu0 %v434
        %v436 = vpop.xlane.xlu0 %435
        %v437 = vsel %vm363, %v423, 0.0
        %438 = vadd.xlane.f32.xlu0 %v437
        %v439 = vpop.xlane.xlu0 %438
        %v440 = vsel %vm363, %v424, 0.0
        %441 = vadd.xlane.f32.xlu0 %v440
        %v442 = vpop.xlane.xlu0 %441
        %v443 = vsel %vm363, %v425, 0.0
        %444 = vadd.xlane.f32.xlu0 %v443
        %v445 = vpop.xlane.xlu0 %444
        %v446 = vsel %vm363, %v426, 0.0
        %447 = vadd.xlane.f32.xlu0 %v446
        %v448 = vpop.xlane.xlu0 %447
        %v449 = vsel %vm363, %v427, 0.0
        %450 = vadd.xlane.f32.xlu0 %v449
        %v451 = vpop.xlane.xlu0 %450
        %v452 = vmul.f32 %v355, %v355
        %v453 = vmul.f32 %v356, %v356
        %v454 = vmul.f32 %v357, %v357
        %v455 = vmul.f32 %v358, %v358
        %v456 = vmul.f32 %v359, %v359
        %v457 = vmul.f32 %v360, %v360
        %v458 = vmul.f32 %v361, %v361
        %v459 = vmul.f32 %v362, %v362
        %v460 = vsel %vm363, %v452, 0.0
        %461 = vadd.xlane.f32.xlu0 %v460
        %v462 = vpop.xlane.xlu0 %461
        %v463 = vsel %vm363, %v453, 0.0
        %464 = vadd.xlane.f32.xlu0 %v463
        %v465 = vpop.xlane.xlu0 %464
        %v466 = vsel %vm363, %v454, 0.0
        %467 = vadd.xlane.f32.xlu0 %v466
        %v468 = vpop.xlane.xlu0 %467
        %v469 = vsel %vm363, %v455, 0.0
        %470 = vadd.xlane.f32.xlu0 %v469
        %v471 = vpop.xlane.xlu0 %470
        %v472 = vsel %vm363, %v456, 0.0
        %473 = vadd.xlane.f32.xlu0 %v472
        %v474 = vpop.xlane.xlu0 %473
        %v475 = vsel %vm363, %v457, 0.0
        %476 = vadd.xlane.f32.xlu0 %v475
        %v477 = vpop.xlane.xlu0 %476
        %v478 = vsel %vm363, %v458, 0.0
        %479 = vadd.xlane.f32.xlu0 %v478
        %v480 = vpop.xlane.xlu0 %479
        %v481 = vsel %vm363, %v459, 0.0
        %482 = vadd.xlane.f32.xlu0 %v481
        %v483 = vpop.xlane.xlu0 %482
        %v484 = vadd.f32 %v430, %v462
        %v485 = vadd.f32 %v433, %v465
        %v486 = vadd.f32 %v436, %v468
        %v487 = vadd.f32 %v439, %v471
        %v488 = vadd.f32 %v442, %v474
        %v489 = vadd.f32 %v445, %v477
        %v490 = vadd.f32 %v448, %v480
        %v491 = vadd.f32 %v451, %v483
        %v492 = vmul.f32 %v412, 0.0078125
        %v493 = vmul.f32 %v413, 0.0078125
        %v494 = vmul.f32 %v414, 0.0078125
        %v495 = vmul.f32 %v415, 0.0078125
        %v496 = vmul.f32 %v416, 0.0078125
        %v497 = vmul.f32 %v417, 0.0078125
        %v498 = vmul.f32 %v418, 0.0078125
        %v499 = vmul.f32 %v419, 0.0078125
        %v500 = vmul.f32 %v484, 0.0078125
        %v501 = vmul.f32 %v485, 0.0078125
        %v502 = vmul.f32 %v486, 0.0078125
        %v503 = vmul.f32 %v487, 0.0078125
        %v504 = vmul.f32 %v488, 0.0078125
        %v505 = vmul.f32 %v489, 0.0078125
        %v506 = vmul.f32 %v490, 0.0078125
        %v507 = vmul.f32 %v491, 0.0078125
        %v508 = vmul.f32 %v492, %v492
        %v509 = vmul.f32 %v493, %v493
        %v510 = vmul.f32 %v494, %v494
        %v511 = vmul.f32 %v495, %v495
        %v512 = vmul.f32 %v496, %v496
        %v513 = vmul.f32 %v497, %v497
        %v514 = vmul.f32 %v498, %v498
        %v515 = vmul.f32 %v499, %v499
        %v516 = vsub.f32 %v500, %v508
        %v517 = vsub.f32 %v501, %v509
        %v518 = vsub.f32 %v502, %v510
        %v519 = vsub.f32 %v503, %v511
        %v520 = vsub.f32 %v504, %v512
        %v521 = vsub.f32 %v505, %v513
        %v522 = vsub.f32 %v506, %v514
        %v523 = vsub.f32 %v507, %v515
        %v524 = vadd.f32 %v516, 1e-05
        %v525 = vadd.f32 %v517, 1e-05
        %v526 = vadd.f32 %v518, 1e-05
        %v527 = vadd.f32 %v519, 1e-05
        %v528 = vadd.f32 %v520, 1e-05
        %v529 = vadd.f32 %v521, 1e-05
        %v530 = vadd.f32 %v522, 1e-05
        %v531 = vadd.f32 %v523, 1e-05
        %v532 = vrsqrt.pop %v524
        %v533 = vrsqrt.pop %v525
        %v534 = vrsqrt.pop %v526
        %v535 = vrsqrt.pop %v527
        %v536 = vrsqrt.pop %v528
        %v537 = vrsqrt.pop %v529
        %v538 = vrsqrt.pop %v530
        %v539 = vrsqrt.pop %v531
        %v540 = vld [vmem:[#allocation6] sm:$0xff]
        %v541 = vld [vmem:[#allocation6 + $0x8] sm:$0xff]
        %v542 = vld [vmem:[#allocation6 + $0x10] sm:$0xff]
        %v543 = vld [vmem:[#allocation6 + $0x18] sm:$0xff]
        %v544 = vld [vmem:[#allocation6 + $0x20] sm:$0xff]
        %v545 = vld [vmem:[#allocation6 + $0x28] sm:$0xff]
        %v546 = vld [vmem:[#allocation6 + $0x30] sm:$0xff]
        %v547 = vld [vmem:[#allocation6 + $0x38] sm:$0xff]
        %v548 = vld [vmem:[#allocation7] sm:$0xff]
        %v549 = vld [vmem:[#allocation7 + $0x8] sm:$0xff]
        %v550 = vld [vmem:[#allocation7 + $0x10] sm:$0xff]
        %v551 = vld [vmem:[#allocation7 + $0x18] sm:$0xff]
        %v552 = vld [vmem:[#allocation7 + $0x20] sm:$0xff]
        %v553 = vld [vmem:[#allocation7 + $0x28] sm:$0xff]
        %v554 = vld [vmem:[#allocation7 + $0x30] sm:$0xff]
        %v555 = vld [vmem:[#allocation7 + $0x38] sm:$0xff]
        %v557 = vsel %vm363, %v355, 0
        %v560 = vsel %vm363, %v356, 0
        %v563 = vsel %vm363, %v357, 0
        %v566 = vsel %vm363, %v358, 0
        %v569 = vsel %vm363, %v359, 0
        %v572 = vsel %vm363, %v360, 0
        %v575 = vsel %vm363, %v361, 0
        %v578 = vsel %vm363, %v362, 0
        %580 = vmatprep.subr.mxu0 0.0
        %581 = vmatpush1.msra.mxu0 %v548
        %582 = vmatprep.subr.mxu0 0.0
        %583 = vmatpush1.msra.mxu0 %v549
        %584 = vmatprep.subr.mxu0 0.0
        %585 = vmatpush1.msra.mxu0 %v550
        %586 = vmatprep.subr.mxu0 0.0
        %587 = vmatpush1.msra.mxu0 %v551
        %588 = vmatprep.subr.mxu0 0.0
        %589 = vmatpush1.msra.mxu0 %v552
        %590 = vmatprep.subr.mxu0 0.0
        %591 = vmatpush1.msra.mxu0 %v553
        %592 = vmatprep.subr.mxu0 0.0
        %593 = vmatpush1.msra.mxu0 %v554
        %594 = vmatprep.subr.mxu0 0.0
        %595 = vmatpush1.msra.mxu0 %v555
        %596 = vmatprep.subr.mxu0 0.0
        %597 = vmatpush1.msra.mxu0 0.0
        %598 = vmatprep.subr.mxu0 0.0
        %599 = vmatpush1.msra.mxu0 0.0
        %600 = vmatprep.subr.mxu0 0.0
        %601 = vmatpush1.msra.mxu0 0.0
        %602 = vmatprep.subr.mxu0 0.0
        %603 = vmatpush1.msra.mxu0 0.0
        %604 = vmatprep.subr.mxu0 0.0
        %605 = vmatpush1.msra.mxu0 0.0
        %606 = vmatprep.subr.mxu0 0.0
        %607 = vmatpush1.msra.mxu0 0.0
        %608 = vmatprep.subr.mxu0 0.0
        %609 = vmatpush1.msra.mxu0 0.0
        %610 = vmatprep.subr.mxu0 0.0
        %611 = vmatpush1.msra.mxu0 0.0
        %612 = vmatprep.subr.mxu0 0.0
        %613 = vmatpush1.msra.mxu0 0.0
        %614 = vmatprep.subr.mxu0 0.0
        %615 = vmatpush1.msra.mxu0 0.0
        %616 = vmatprep.subr.mxu0 0.0
        %617 = vmatpush1.msra.mxu0 0.0
        %618 = vmatprep.subr.mxu0 0.0
        %619 = vmatpush1.msra.mxu0 0.0
        %620 = vmatprep.subr.mxu0 0.0
        %621 = vmatpush1.msra.mxu0 0.0
        %622 = vmatprep.subr.mxu0 0.0
        %623 = vmatpush1.msra.mxu0 0.0
        %624 = vmatprep.subr.mxu0 0.0
        %625 = vmatpush1.msra.mxu0 0.0
        %626 = vmatprep.subr.mxu0 0.0
        %627 = vmatpush1.msra.mxu0 0.0
        %628 = vmatprep.subr.mxu0 0.0
        %629 = vmatpush1.msra.mxu0 0.0
        %630 = vmatprep.subr.mxu0 0.0
        %631 = vmatpush1.msra.mxu0 0.0
        %632 = vmatprep.subr.mxu0 0.0
        %633 = vmatpush1.msra.mxu0 0.0
        %634 = vmatprep.subr.mxu0 0.0
        %635 = vmatpush1.msra.mxu0 0.0
        %636 = vmatprep.subr.mxu0 0.0
        %637 = vmatpush1.msra.mxu0 0.0
        %638 = vmatprep.subr.mxu0 0.0
        %639 = vmatpush1.msra.mxu0 0.0
        %640 = vmatprep.subr.mxu0 0.0
        %641 = vmatpush1.msra.mxu0 0.0
        %642 = vmatprep.subr.mxu0 0.0
        %643 = vmatpush1.msra.mxu0 0.0
        %644 = vmatprep.mubr.f32.mxu0 0.0
        %645 = vmatmul.mubr.f32.gmra.mrb[0].mxu0 %v557
        %v646 = vpop.f32.mrb[0].mxu0
        %v647 = vadd.f32 0.0, %v646
        %v648 = vpop.f32.mrb[0].mxu0
        %649 = vmatprep.mubr.f32.mxu0 0.0
        %650 = vmatmul.mubr.f32.gmra.mrb[0].mxu0 %v560
        %v651 = vpop.f32.mrb[0].mxu0
        %v652 = vadd.f32 0.0, %v651
        %v653 = vpop.f32.mrb[0].mxu0
        %654 = vmatprep.mubr.f32.mxu0 0.0
        %655 = vmatmul.mubr.f32.gmra.mrb[0].mxu0 %v563
        %v656 = vpop.f32.mrb[0].mxu0
        %v657 = vadd.f32 0.0, %v656
        %v658 = vpop.f32.mrb[0].mxu0
        %659 = vmatprep.mubr.f32.mxu0 0.0
        %660 = vmatmul.mubr.f32.gmra.mrb[0].mxu0 %v566
        %v661 = vpop.f32.mrb[0].mxu0
        %v662 = vadd.f32 0.0, %v661
        %v663 = vpop.f32.mrb[0].mxu0
        %664 = vmatprep.mubr.f32.mxu0 0.0
        %665 = vmatmul.mubr.f32.gmra.mrb[0].mxu0 %v569
        %v666 = vpop.f32.mrb[0].mxu0
        %v667 = vadd.f32 0.0, %v666
        %v668 = vpop.f32.mrb[0].mxu0
        %669 = vmatprep.mubr.f32.mxu0 0.0
        %670 = vmatmul.mubr.f32.gmra.mrb[0].mxu0 %v572
        %v671 = vpop.f32.mrb[0].mxu0
        %v672 = vadd.f32 0.0, %v671
        %v673 = vpop.f32.mrb[0].mxu0
        %674 = vmatprep.mubr.f32.mxu0 0.0
        %675 = vmatmul.mubr.f32.gmra.mrb[0].mxu0 %v575
        %v676 = vpop.f32.mrb[0].mxu0
        %v677 = vadd.f32 0.0, %v676
        %v678 = vpop.f32.mrb[0].mxu0
        %679 = vmatprep.mubr.f32.mxu0 0.0
        %680 = vmatmul.mubr.f32.gmra.mrb[0].mxu0 %v578
        %v681 = vpop.f32.mrb[0].mxu0
        %v682 = vadd.f32 0.0, %v681
        %v683 = vpop.f32.mrb[0].mxu0
        %684 = vdwg.mxu0
        %v686 = vsel %vm363, %v347, 0
        %v689 = vsel %vm363, %v348, 0
        %v692 = vsel %vm363, %v349, 0
        %v695 = vsel %vm363, %v350, 0
        %v698 = vsel %vm363, %v351, 0
        %v701 = vsel %vm363, %v352, 0
        %v704 = vsel %vm363, %v353, 0
        %v707 = vsel %vm363, %v354, 0
        %709 = vmatprep.subr.mxu0 0.0
        %710 = vmatpush1.msra.mxu0 %v540
        %711 = vmatprep.subr.mxu0 0.0
        %712 = vmatpush1.msra.mxu0 %v541
        %713 = vmatprep.subr.mxu0 0.0
        %714 = vmatpush1.msra.mxu0 %v542
        %715 = vmatprep.subr.mxu0 0.0
        %716 = vmatpush1.msra.mxu0 %v543
        %717 = vmatprep.subr.mxu0 0.0
        %718 = vmatpush1.msra.mxu0 %v544
        %719 = vmatprep.subr.mxu0 0.0
        %720 = vmatpush1.msra.mxu0 %v545
        %721 = vmatprep.subr.mxu0 0.0
        %722 = vmatpush1.msra.mxu0 %v546
        %723 = vmatprep.subr.mxu0 0.0
        %724 = vmatpush1.msra.mxu0 %v547
        %725 = vmatprep.subr.mxu0 0.0
        %726 = vmatpush1.msra.mxu0 0.0
        %727 = vmatprep.subr.mxu0 0.0
        %728 = vmatpush1.msra.mxu0 0.0
        %729 = vmatprep.subr.mxu0 0.0
        %730 = vmatpush1.msra.mxu0 0.0
        %731 = vmatprep.subr.mxu0 0.0
        %732 = vmatpush1.msra.mxu0 0.0
        %733 = vmatprep.subr.mxu0 0.0
        %734 = vmatpush1.msra.mxu0 0.0
        %735 = vmatprep.subr.mxu0 0.0
        %736 = vmatpush1.msra.mxu0 0.0
        %737 = vmatprep.subr.mxu0 0.0
        %738 = vmatpush1.msra.mxu0 0.0
        %739 = vmatprep.subr.mxu0 0.0
        %740 = vmatpush1.msra.mxu0 0.0
        %741 = vmatprep.subr.mxu0 0.0
        %742 = vmatpush1.msra.mxu0 0.0
        %743 = vmatprep.subr.mxu0 0.0
        %744 = vmatpush1.msra.mxu0 0.0
        %745 = vmatprep.subr.mxu0 0.0
        %746 = vmatpush1.msra.mxu0 0.0
        %747 = vmatprep.subr.mxu0 0.0
        %748 = vmatpush1.msra.mxu0 0.0
        %749 = vmatprep.subr.mxu0 0.0
        %750 = vmatpush1.msra.mxu0 0.0
        %751 = vmatprep.subr.mxu0 0.0
        %752 = vmatpush1.msra.mxu0 0.0
        %753 = vmatprep.subr.mxu0 0.0
        %754 = vmatpush1.msra.mxu0 0.0
        %755 = vmatprep.subr.mxu0 0.0
        %756 = vmatpush1.msra.mxu0 0.0
        %757 = vmatprep.subr.mxu0 0.0
        %758 = vmatpush1.msra.mxu0 0.0
        %759 = vmatprep.subr.mxu0 0.0
        %760 = vmatpush1.msra.mxu0 0.0
        %761 = vmatprep.subr.mxu0 0.0
        %762 = vmatpush1.msra.mxu0 0.0
        %763 = vmatprep.subr.mxu0 0.0
        %764 = vmatpush1.msra.mxu0 0.0
        %765 = vmatprep.subr.mxu0 0.0
        %766 = vmatpush1.msra.mxu0 0.0
        %767 = vmatprep.subr.mxu0 0.0
        %768 = vmatpush1.msra.mxu0 0.0
        %769 = vmatprep.subr.mxu0 0.0
        %770 = vmatpush1.msra.mxu0 0.0
        %771 = vmatprep.subr.mxu0 0.0
        %772 = vmatpush1.msra.mxu0 0.0
        %773 = vmatprep.mubr.f32.mxu0 0.0
        %774 = vmatmul.mubr.f32.gmra.mrb[0].mxu0 %v686
        %v775 = vpop.f32.mrb[0].mxu0
        %v776 = vadd.f32 %v647, %v775
        %v777 = vpop.f32.mrb[0].mxu0
        %778 = vmatprep.mubr.f32.mxu0 0.0
        %779 = vmatmul.mubr.f32.gmra.mrb[0].mxu0 %v689
        %v780 = vpop.f32.mrb[0].mxu0
        %v781 = vadd.f32 %v652, %v780
        %v782 = vpop.f32.mrb[0].mxu0
        %783 = vmatprep.mubr.f32.mxu0 0.0
        %784 = vmatmul.mubr.f32.gmra.mrb[0].mxu0 %v692
        %v785 = vpop.f32.mrb[0].mxu0
        %v786 = vadd.f32 %v657, %v785
        %v787 = vpop.f32.mrb[0].mxu0
        %788 = vmatprep.mubr.f32.mxu0 0.0
        %789 = vmatmul.mubr.f32.gmra.mrb[0].mxu0 %v695
        %v790 = vpop.f32.mrb[0].mxu0
        %v791 = vadd.f32 %v662, %v790
        %v792 = vpop.f32.mrb[0].mxu0
        %793 = vmatprep.mubr.f32.mxu0 0.0
        %794 = vmatmul.mubr.f32.gmra.mrb[0].mxu0 %v698
        %v795 = vpop.f32.mrb[0].mxu0
        %v796 = vadd.f32 %v667, %v795
        %v797 = vpop.f32.mrb[0].mxu0
        %798 = vmatprep.mubr.f32.mxu0 0.0
        %799 = vmatmul.mubr.f32.gmra.mrb[0].mxu0 %v701
        %v800 = vpop.f32.mrb[0].mxu0
        %v801 = vadd.f32 %v672, %v800
        %v802 = vpop.f32.mrb[0].mxu0
        %803 = vmatprep.mubr.f32.mxu0 0.0
        %804 = vmatmul.mubr.f32.gmra.mrb[0].mxu0 %v704
        %v805 = vpop.f32.mrb[0].mxu0
        %v806 = vadd.f32 %v677, %v805
        %v807 = vpop.f32.mrb[0].mxu0
        %808 = vmatprep.mubr.f32.mxu0 0.0
        %809 = vmatmul.mubr.f32.gmra.mrb[0].mxu0 %v707
        %v810 = vpop.f32.mrb[0].mxu0
        %v811 = vadd.f32 %v682, %v810
        %v812 = vpop.f32.mrb[0].mxu0
        %813 = vdwg.mxu0
        %v814 = vld [vmem:[%s4] sm:$0x1]
        %v816 = vlaneseq
        %v817 = vshrl.u32 %v816, 7
        %v818 = vsub.s32 0, %v817
        %v819 = vrot.slane %v814, %v818
        %v821 = vmul.f32 %v492, %v819
        %v822 = vmul.f32 %v493, %v819
        %v823 = vmul.f32 %v494, %v819
        %v824 = vmul.f32 %v495, %v819
        %v825 = vmul.f32 %v496, %v819
        %v826 = vmul.f32 %v497, %v819
        %v827 = vmul.f32 %v498, %v819
        %v828 = vmul.f32 %v499, %v819
        %v829 = vsub.f32 %v776, %v821
        %v830 = vsub.f32 %v781, %v822
        %v831 = vsub.f32 %v786, %v823
        %v832 = vsub.f32 %v791, %v824
        %v833 = vsub.f32 %v796, %v825
        %v834 = vsub.f32 %v801, %v826
        %v835 = vsub.f32 %v806, %v827
        %v836 = vsub.f32 %v811, %v828
        %v837 = vmul.f32 %v829, %v532
        %v838 = vmul.f32 %v830, %v533
        %v839 = vmul.f32 %v831, %v534
        %v840 = vmul.f32 %v832, %v535
        %v841 = vmul.f32 %v833, %v536
        %v842 = vmul.f32 %v834, %v537
        %v843 = vmul.f32 %v835, %v538
        %v844 = vmul.f32 %v836, %v539
        %v845 = vld [vmem:[%s5] sm:$0x1]
        %v847 = vlaneseq
        %v848 = vshrl.u32 %v847, 7
        %v849 = vsub.s32 0, %v848
        %v850 = vrot.slane %v845, %v849
        %v852 = vadd.f32 %v837, %v850
        %v853 = vadd.f32 %v838, %v850
        %v854 = vadd.f32 %v839, %v850
        %v855 = vadd.f32 %v840, %v850
        %v856 = vadd.f32 %v841, %v850
        %v857 = vadd.f32 %v842, %v850
        %v858 = vadd.f32 %v843, %v850
        %v859 = vadd.f32 %v844, %v850
        %860 = vst.msk [vmem:[%s345] sm:$0xff] %vm363, %v852
        %861 = vst.msk [vmem:[%s345 + $0x8] sm:$0xff] %vm363, %v853
        %862 = vst.msk [vmem:[%s345 + $0x10] sm:$0xff] %vm363, %v854
        %863 = vst.msk [vmem:[%s345 + $0x18] sm:$0xff] %vm363, %v855
        %864 = vst.msk [vmem:[%s345 + $0x20] sm:$0xff] %vm363, %v856
        %865 = vst.msk [vmem:[%s345 + $0x28] sm:$0xff] %vm363, %v857
        %866 = vst.msk [vmem:[%s345 + $0x30] sm:$0xff] %vm363, %v858
        %867 = vst.msk [vmem:[%s345 + $0x38] sm:$0xff] %vm363, %v859
        %s868 = smul.u32 8, %s24
        %p869 = scmp.lt.s32.totalorder %s868, 15
        %s870 = scalar_select %p869, %s868, 15
        %s871 = smul.addr %s870, 8
        %s872 = scalar_lea.vmem %s6, %s871
        // Predicated region
        $region61: #{tpu_custom_call.1} parent=43 // pred_check
          %p873 = pneg %p178
        $region62: #{tpu_custom_call.1} parent=43 // pred_check_branch
          %875 = sbr.rel (%p873) target = $region64
        $region63: #{tpu_custom_call.1} parent=43 // pred_region
          %s876 = smul.u32 8, %s24
        $region64: #{tpu_custom_call.1} parent=43 // pred_fallthru
          _
      $region44: #{tpu_custom_call.1} parent=5 // pred_fallthru
        _
      %p877 = scmp.le.s32.totalorder 2, %s19
      // Predicated region
      $region65: #{tpu_custom_call.1} parent=5 // pred_check
        %p878 = pneg %p877
      $region66: #{tpu_custom_call.1} parent=5 // pred_check_branch
        %880 = sbr.rel (%p878) target = $region68
      $region67: #{tpu_custom_call.1} parent=5 // pred_region
        %s881 = ssub.s32 %s19, 2
        // Predicated region
        $region69: #{tpu_custom_call.1} parent=67 // pred_check
          %p882 = pneg %p184
        $region70: #{tpu_custom_call.1} parent=67 // pred_check_branch
          %884 = sbr.rel (%p882) target = $region72
        $region71: #{tpu_custom_call.1} parent=67 // pred_region
          %s885 = smul.u32 8, %s25
          %p886 = scmp.lt.s32.totalorder %s885, 15
          %s887 = scalar_select %p886, %s885, 15
          %s888 = smul.addr %s887, 8
          %s889 = scalar_lea.vmem %s6, %s888
        $region72: #{tpu_custom_call.1} parent=67 // pred_fallthru
          _
      $region68: #{tpu_custom_call.1} parent=5 // pred_fallthru
        _
    $region6: #{tpu_custom_call.1} parent=1 // loop_footer
      %s23 = sadd.s32 1, %s19
    $region7: #{tpu_custom_call.1} parent=1 // loop_footer_branch
      %18 = sbr.rel target = $region3
    $region8: #{tpu_custom_call.1} parent=1 // loop_exit
      _
    %890 = vsyncpa [#allocation3], 1
    %s891 = scalar_lea.sflag [#allocation3], 1
    %892 = vsyncpa %s891, 1
    %893 = vsyncpa [#allocation5], 1
    %s894 = scalar_lea.sflag [#allocation5], 1
    %895 = vsyncpa %s894, 1
    %896 = vsyncpa [#allocation8], 1

</llo_original>
